<compile_context>
chip_gen: v7x
topology: tpu7x:2x2x1
jax: 0.10.0
libtpu: 0.0.40
codegen_flags: <defaults>
</compile_context>

<pallas_src>
import functools

import jax
import jax.numpy as jnp
import numpy as np
from jax import lax
from jax.experimental import pallas as pl
from jax.experimental.pallas import tpu as pltpu


def _layernorm_kernel(x_ref, g_ref, b_ref, o_ref, *, eps, inv_d):
    # x_ref: (TR, D)  row tile (rows = flattened leading dims, lanes = features)
    # g_ref: (1, D)   LayerNorm weight (gamma), resident
    # b_ref: (1, D)   LayerNorm bias   (beta),  resident
    # o_ref: (TR, D)
    x = x_ref[...].astype(jnp.float32)                      # (TR, D)
    # Single-pass moments: two independent XLU reductions, one fewer VPU pass.
    s1 = jnp.sum(x, axis=-1, keepdims=True)                 # (TR, 1)
    s2 = jnp.sum(x * x, axis=-1, keepdims=True)             # (TR, 1)
    mean = s1 * inv_d
    var = jnp.maximum(s2 * inv_d - mean * mean, 0.0)        # guard f32 cancellation
    inv = lax.rsqrt(var + eps)                              # EUP slot
    g = g_ref[...].astype(jnp.float32)
    b = b_ref[...].astype(jnp.float32)
    y = (x - mean) * inv * g + b
    o_ref[...] = y.astype(o_ref.dtype)                      # single bulk store


def _round_up(v, m):
    return ((v + m - 1) // m) * m


def _choose_row_tile(R, D, itemsize, *, target_tile_bytes=2 * 1024 * 1024):
    """Largest row tile (multiple of 8 sublanes) within a per-buffer byte budget."""
    tr = (max(8, target_tile_bytes // max(1, D * itemsize)) // 8) * 8
    tr = max(8, tr)
    tr = min(tr, _round_up(R, 8))            # never bigger than the row count
    # v7x megacore: keep the parallel grid >= 2 steps when possible so both
    # TensorCores get work; v5e/v6e (1 TC) are unaffected.
    if R > 8 and pl.cdiv(R, tr) < 2:
        tr = max(8, _round_up(pl.cdiv(R, 2), 8))
    return tr


def layernorm(x, gamma, beta, *, eps=1e-5):
    """Pallas LayerNorm over the last axis of x (PyTorch nn.LayerNorm semantics)."""
    orig_shape = x.shape
    D = orig_shape[-1]
    x2 = x.reshape(-1, D)                    # fold batch/seq into rows -> sublane-dense
    R = x2.shape[0]
    itemsize = jnp.dtype(x.dtype).itemsize

    tr = _choose_row_tile(R, D, itemsize)
    grid = pl.cdiv(R, tr)                    # ragged last block: partial writeback only

    # NOTE: if D is not a multiple of 128 (e.g. the tiny demo D=32), stores are
    # masked vst.msk; accepted for small feature dims, lane-dense for real ones.
    g2 = gamma.reshape(1, D)
    b2 = beta.reshape(1, D)

    cost = pl.CostEstimate(
        flops=8 * R * D,
        transcendentals=R,
        bytes_accessed=2 * R * D * itemsize + 2 * D * jnp.dtype(gamma.dtype).itemsize,
    )

    out = pl.pallas_call(
        functools.partial(_layernorm_kernel, eps=float(eps), inv_d=1.0 / float(D)),
        out_shape=jax.ShapeDtypeStruct((R, D), x.dtype),
        grid_spec=pltpu.PrefetchScalarGridSpec(
            num_scalar_prefetch=0,
            grid=(grid,),
            in_specs=[
                pl.BlockSpec((tr, D), lambda i: (i, 0)),   # row tile of x
                pl.BlockSpec((1, D), lambda i: (0, 0)),    # gamma (resident)
                pl.BlockSpec((1, D), lambda i: (0, 0)),    # beta  (resident)
            ],
            out_specs=pl.BlockSpec((tr, D), lambda i: (i, 0)),
        ),
        compiler_params=pltpu.CompilerParams(
            dimension_semantics=("parallel",),             # rows shard across v7x TCs
            vmem_limit_bytes=32 * 1024 * 1024,
        ),
        cost_estimate=cost,
    )(x2, g2, b2)

    return out.reshape(orig_shape)


def prenorm(x, gamma, beta, fn=None, *, eps=1e-5, **kwargs):
    """PreNorm.forward: fn(LayerNorm(x), **kwargs)."""
    y = layernorm(x, gamma, beta, eps=eps)
    # TODO(synk): `fn` is an arbitrary wrapped nn.Module in the PyTorch spec; when it
    # starts with a matmul, fuse the row-tile normalization into that matmul kernel to
    # avoid one HBM write + read of y. Here it is applied as a plain JAX callable.
    if fn is None:
        return y
    return fn(y, **kwargs)


def _reference(x, gamma, beta, eps=1e-5):
    mean = jnp.mean(x, axis=-1, keepdims=True)
    var = jnp.mean((x - mean) ** 2, axis=-1, keepdims=True)
    return (x - mean) / jnp.sqrt(var + eps) * gamma + beta


if __name__ == "__main__":
    # Small shapes consistent with PreNorm over a (batch, seq, dim) tensor.
    B, N, D = 2, 16, 32
    key = jax.random.PRNGKey(0)
    kx, kg, kb = jax.random.split(key, 3)
    x = jax.random.normal(kx, (B, N, D), dtype=jnp.float32)
    # Non-trivial affine params (PyTorch inits gamma=1, beta=0; perturb for a real test).
    gamma = 1.0 + 0.1 * jax.random.normal(kg, (D,), dtype=jnp.float32)
    beta = 0.1 * jax.random.normal(kb, (D,), dtype=jnp.float32)

    out = jax.block_until_ready(prenorm(x, gamma, beta, fn=None))
    ref = jax.block_until_ready(_reference(x, gamma, beta))
    assert out.shape == ref.shape, (out.shape, ref.shape)
    np.testing.assert_allclose(np.asarray(out), np.asarray(ref), rtol=1e-5, atol=1e-5)

    # Ragged-row check (R % tr != 0): verifies the partial last block is written
    # back correctly with no wrapper-side padding or output slicing.
    x3 = jax.random.normal(jax.random.PRNGKey(1), (3, 7, D), dtype=jnp.float32)
    out3 = jax.block_until_ready(prenorm(x3, gamma, beta, fn=None))
    np.testing.assert_allclose(np.asarray(out3),
                               np.asarray(_reference(x3, gamma, beta)),
                               rtol=1e-5, atol=1e-5)

    print("KERNEL_OK")
</pallas_src>

<mosaic_0001>
module attributes {stable_mosaic.version = 11 : i64} {
  func.func @_layernorm_kernel(%arg0: i32, %arg1: memref<16x32xf32, #tpu.memory_space<vmem>>, %arg2: memref<1x32xf32, #tpu.memory_space<vmem>>, %arg3: memref<1x32xf32, #tpu.memory_space<vmem>>, %arg4: memref<16x32xf32, #tpu.memory_space<vmem>>) attributes {dimension_semantics = [#tpu.dimension_semantics<parallel>], iteration_bounds = array<i64: 2>, scalar_prefetch = 0 : i64, scratch_operands = 0 : i64, tpu.core_type = #tpu.core_type<tc>, window_params = [{transform_indices = @transform_0, window_bounds = array<i64: 16, 32>}, {pipeline_mode = #tpu.pipeline_mode<synchronous>, transform_indices = @transform_1, window_bounds = array<i64: 1, 32>}, {pipeline_mode = #tpu.pipeline_mode<synchronous>, transform_indices = @transform_2, window_bounds = array<i64: 1, 32>}, {transform_indices = @transform_3, window_bounds = array<i64: 16, 32>}]} {
    %c0 = arith.constant 0 : index
    %c0_0 = arith.constant 0 : index
    %0 = vector.load %arg1[%c0, %c0_0] : memref<16x32xf32, #tpu.memory_space<vmem>>, vector<16x32xf32>
    %cst = arith.constant dense<0.000000e+00> : vector<16xf32>
    %1 = vector.multi_reduction <add>, %0, %cst [1] : vector<16x32xf32> to vector<16xf32>
    %2 = vector.shape_cast %1 : vector<16xf32> to vector<16x1xf32>
    %3 = arith.mulf %0, %0 : vector<16x32xf32>
    %cst_1 = arith.constant dense<0.000000e+00> : vector<16xf32>
    %4 = vector.multi_reduction <add>, %3, %cst_1 [1] : vector<16x32xf32> to vector<16xf32>
    %5 = vector.shape_cast %4 : vector<16xf32> to vector<16x1xf32>
    %cst_2 = arith.constant 3.125000e-02 : f32
    %6 = vector.broadcast %cst_2 : f32 to vector<16x1xf32>
    %7 = arith.mulf %2, %6 : vector<16x1xf32>
    %cst_3 = arith.constant 3.125000e-02 : f32
    %8 = vector.broadcast %cst_3 : f32 to vector<16x1xf32>
    %9 = arith.mulf %5, %8 : vector<16x1xf32>
    %10 = arith.mulf %7, %7 : vector<16x1xf32>
    %11 = arith.subf %9, %10 : vector<16x1xf32>
    %cst_4 = arith.constant 0.000000e+00 : f32
    %12 = vector.broadcast %cst_4 : f32 to vector<16x1xf32>
    %13 = arith.maximumf %11, %12 : vector<16x1xf32>
    %cst_5 = arith.constant 9.99999974E-6 : f32
    %14 = vector.broadcast %cst_5 : f32 to vector<16x1xf32>
    %15 = arith.addf %13, %14 : vector<16x1xf32>
    %16 = math.rsqrt %15 : vector<16x1xf32>
    %c0_6 = arith.constant 0 : index
    %c0_7 = arith.constant 0 : index
    %17 = vector.load %arg2[%c0_6, %c0_7] : memref<1x32xf32, #tpu.memory_space<vmem>>, vector<1x32xf32>
    %c0_8 = arith.constant 0 : index
    %c0_9 = arith.constant 0 : index
    %18 = vector.load %arg3[%c0_8, %c0_9] : memref<1x32xf32, #tpu.memory_space<vmem>>, vector<1x32xf32>
    %19 = vector.broadcast %7 : vector<16x1xf32> to vector<16x32xf32>
    %20 = arith.subf %0, %19 : vector<16x32xf32>
    %21 = vector.broadcast %16 : vector<16x1xf32> to vector<16x32xf32>
    %22 = arith.mulf %20, %21 : vector<16x32xf32>
    %23 = vector.broadcast %17 : vector<1x32xf32> to vector<16x32xf32>
    %24 = arith.mulf %22, %23 : vector<16x32xf32>
    %25 = vector.broadcast %18 : vector<1x32xf32> to vector<16x32xf32>
    %26 = arith.addf %24, %25 : vector<16x32xf32>
    %c0_10 = arith.constant 0 : index
    %c0_11 = arith.constant 0 : index
    %27 = vector.load %arg4[%c0_10, %c0_11] : memref<16x32xf32, #tpu.memory_space<vmem>>, vector<16x32xf32>
    tpu.vector_store %arg4[%c0_10, %c0_11], %26 {strides = array<i32>} : memref<16x32xf32, #tpu.memory_space<vmem>>, vector<16x32xf32>,
    return
  }
  func.func @transform_0(%arg0: i32) -> (i32, i32) {
    %c0_i32 = arith.constant 0 : i32
    %c0_i32_0 = arith.constant 0 : i32
    return %arg0, %c0_i32 : i32, i32
  }
  func.func @transform_1(%arg0: i32) -> (i32, i32) {
    %c0_i32 = arith.constant 0 : i32
    %c0_i32_0 = arith.constant 0 : i32
    %c0_i32_1 = arith.constant 0 : i32
    return %c0_i32, %c0_i32_0 : i32, i32
  }
  func.func @transform_2(%arg0: i32) -> (i32, i32) {
    %c0_i32 = arith.constant 0 : i32
    %c0_i32_0 = arith.constant 0 : i32
    %c0_i32_1 = arith.constant 0 : i32
    return %c0_i32, %c0_i32_0 : i32, i32
  }
  func.func @transform_3(%arg0: i32) -> (i32, i32) {
    %c0_i32 = arith.constant 0 : i32
    %c0_i32_0 = arith.constant 0 : i32
    return %arg0, %c0_i32 : i32, i32
  }
}

</mosaic_0001>

<llo_original>
// kernel: tpu_custom_call.1
$region0: #{tpu_custom_call.1}
  #allocation0 [shape = 'u32[]', space=smem, size = 0x4, offset = 0x4, fixed_abs, tag = 'smem constant byte address 0x4 - core index']
  #allocation1 [shape = 'u32[144,128]{1,0:T(1,128)}', space=vmem, size = 0x12000, scoped, tag = 'internal scratch']
  %s0 = inlined_call_operand.hbm [shape: f32[32,32], index: 0, kind: input, shape index: {}]
  %s1 = inlined_call_operand.vmem [shape: f32[1,32], index: 1, kind: input, shape index: {}]
  %s2 = inlined_call_operand.vmem [shape: f32[1,32], index: 2, kind: input, shape index: {}]
  %s3 = inlined_call_operand.hbm [shape: f32[32,32], index: 3, kind: output, shape index: {}]
  %s4 = sld [smem:[#allocation0]]
  $region49: #{tpu_custom_call.1} parent=0
    _
  %s6 = ssub.s32 1, %s4
  %s7 = scalar_select 0, %s6, %s4
  $region1: #{tpu_custom_call.1} parent=0
    #allocation2 [shape = 'u8[16384]{0}', space=vmem, size = 0x4000, scoped, tag = 'input window, operand 0']
    #allocation3 [shape = 's32[2]{0}', space=sflag, size = 0x8, scoped, tag = 'scoped memory for tpu_custom_call.1']
    #allocation4 [shape = 's32[2]{0}', space=sflag, size = 0x8, scoped, tag = 'scoped memory for tpu_custom_call.1']
    #allocation5 [shape = 'u8[16384]{0}', space=vmem, size = 0x4000, scoped, tag = 'output window, operand 0']
    %8 = vsyncpa [#allocation3], 0
    %s9 = scalar_lea.sflag [#allocation3], 1
    %10 = vsyncpa %s9, 0
    %11 = vsyncpa [#allocation4], 0
    %s12 = scalar_lea.sflag [#allocation4], 1
    %13 = vsyncpa %s12, 0
    loop: start=0, step=1, limit=4
    $region2: #{tpu_custom_call.1} parent=1 // loop_pre_header
      _
    $region3: #{tpu_custom_call.1} parent=1 // loop_header
      %s15 = sphi 0, %s19
      %p16 = scmp.ge.s32.totalorder %s15, 4
      %s25 = sphi 0, %s27
      %s28 = sphi 0, %s25
      %s29 = sphi 0, %s28
      %s45 = sphi 0, %s29
      %s49 = sphi 0, %s49
      %s51 = sphi 0, %s49
      %s52 = sphi 0, %s51
      %s66 = sphi 0, %s52
      %s70 = sphi 0, %s70
      %s72 = sphi 0, %s70
      %s73 = sphi 0, %s72
      %s87 = sphi 0, %s73
      %s93 = sphi 0, %s95
      %s96 = sphi 0, %s93
      %s97 = sphi 0, %s96
      %s113 = sphi 0, %s97
    $region4: #{tpu_custom_call.1} parent=1 // loop_header_branch
      %18 = sbr.rel (%p16) target = $region8
    $region5: #{tpu_custom_call.1} parent=1 // loop_body
      %s20 = ssub.s32 %s15, 1
      %s21 = ssub.s32 %s15, 2
      %s22 = sadd.s32 %s15, 1
      %s23 = ssub.s32 %s15, %s22
      %p24 = scmp.eq.s32.totalorder %s23, 0
      %s26 = sadd.s32 %s25, 1
      %s27 = scalar_select %p24, %s25, %s26
      %p30 = pneg %p24
      %p31 = scmp.eq.s32.totalorder %s15, 1
      %p32 = por %p30, %p31
      %p33 = scmp.ne.s32.totalorder %s25, %s28
      %p34 = scmp.eq.s32.totalorder %s15, 0
      %p35 = por %p33, %p34
      %p36 = scmp.ne.s32.totalorder %s25, %s28
      %p37 = scmp.eq.s32.totalorder %s20, 1
      %p38 = por %p36, %p37
      %p39 = scmp.ne.s32.totalorder %s28, %s29
      %p40 = scmp.eq.s32.totalorder %s20, 0
      %p41 = por %p39, %p40
      %p42 = scmp.ne.s32.totalorder %s28, %s29
      %p43 = scmp.eq.s32.totalorder %s21, 1
      %p44 = por %p42, %p43
      %p46 = scmp.ne.s32.totalorder %s29, %s45
      %p47 = scmp.eq.s32.totalorder %s21, 0
      %p48 = por %p46, %p47
      %s50 = sadd.s32 %s49, 1
      %p53 = scmp.eq.s32.totalorder %s15, 1
      %p54 = scmp.ne.s32.totalorder %s49, %s51
      %p55 = scmp.eq.s32.totalorder %s15, 0
      %p56 = por %p54, %p55
      %p57 = scmp.ne.s32.totalorder %s49, %s51
      %p58 = scmp.eq.s32.totalorder %s20, 1
      %p59 = por %p57, %p58
      %p60 = scmp.ne.s32.totalorder %s51, %s52
      %p61 = scmp.eq.s32.totalorder %s20, 0
      %p62 = por %p60, %p61
      %p63 = scmp.ne.s32.totalorder %s51, %s52
      %p64 = scmp.eq.s32.totalorder %s21, 1
      %p65 = por %p63, %p64
      %p67 = scmp.ne.s32.totalorder %s52, %s66
      %p68 = scmp.eq.s32.totalorder %s21, 0
      %p69 = por %p67, %p68
      %s71 = sadd.s32 %s70, 1
      %p74 = scmp.eq.s32.totalorder %s15, 1
      %p75 = scmp.ne.s32.totalorder %s70, %s72
      %p76 = scmp.eq.s32.totalorder %s15, 0
      %p77 = por %p75, %p76
      %p78 = scmp.ne.s32.totalorder %s70, %s72
      %p79 = scmp.eq.s32.totalorder %s20, 1
      %p80 = por %p78, %p79
      %p81 = scmp.ne.s32.totalorder %s72, %s73
      %p82 = scmp.eq.s32.totalorder %s20, 0
      %p83 = por %p81, %p82
      %p84 = scmp.ne.s32.totalorder %s72, %s73
      %p85 = scmp.eq.s32.totalorder %s21, 1
      %p86 = por %p84, %p85
      %p88 = scmp.ne.s32.totalorder %s73, %s87
      %p89 = scmp.eq.s32.totalorder %s21, 0
      %p90 = por %p88, %p89
      %s91 = ssub.s32 %s15, %s22
      %p92 = scmp.eq.s32.totalorder %s91, 0
      %s94 = sadd.s32 %s93, 1
      %s95 = scalar_select %p92, %s93, %s94
      %p98 = pneg %p92
      %p99 = scmp.eq.s32.totalorder %s15, 1
      %p100 = por %p98, %p99
      %p101 = scmp.ne.s32.totalorder %s93, %s96
      %p102 = scmp.eq.s32.totalorder %s15, 0
      %p103 = por %p101, %p102
      %p104 = scmp.ne.s32.totalorder %s93, %s96
      %p105 = scmp.eq.s32.totalorder %s20, 1
      %p106 = por %p104, %p105
      %p107 = scmp.ne.s32.totalorder %s96, %s97
      %p108 = scmp.eq.s32.totalorder %s20, 0
      %p109 = por %p107, %p108
      %p110 = scmp.ne.s32.totalorder %s96, %s97
      %p111 = scmp.eq.s32.totalorder %s21, 1
      %p112 = por %p110, %p111
      %p114 = scmp.ne.s32.totalorder %s97, %s113
      %p115 = scmp.eq.s32.totalorder %s21, 0
      %p116 = por %p114, %p115
      %p117 = scmp.le.s32.totalorder 1, %s15
      %p118 = scmp.lt.s32.totalorder %s15, 3
      %p119 = pnand %p117, %p118
      %p120 = pneg %p119
      // Predicated region
      $region9: #{tpu_custom_call.1} parent=5 // pred_check
        _
      $region10: #{tpu_custom_call.1} parent=5 // pred_check_branch
        %122 = sbr.rel (%p119) target = $region12
      $region11: #{tpu_custom_call.1} parent=5 // pred_region
        %s123 = ssub.s32 %s15, 1
        // Predicated region
        $region13: #{tpu_custom_call.1} parent=11 // pred_check
          %p124 = pneg %p62
        $region14: #{tpu_custom_call.1} parent=11 // pred_check_branch
          %126 = sbr.rel (%p124) target = $region16
        $region15: #{tpu_custom_call.1} parent=11 // pred_region
          _
        $region16: #{tpu_custom_call.1} parent=11 // pred_fallthru
          _
        // Predicated region
        $region17: #{tpu_custom_call.1} parent=11 // pred_check
          %p127 = pneg %p83
        $region18: #{tpu_custom_call.1} parent=11 // pred_check_branch
          %129 = sbr.rel (%p127) target = $region20
        $region19: #{tpu_custom_call.1} parent=11 // pred_region
          _
        $region20: #{tpu_custom_call.1} parent=11 // pred_fallthru
          _
      $region12: #{tpu_custom_call.1} parent=5 // pred_fallthru
        _
      %p130 = scmp.lt.s32.totalorder %s15, 2
      // Predicated region
      $region21: #{tpu_custom_call.1} parent=5 // pred_check
        %p131 = pneg %p130
      $region22: #{tpu_custom_call.1} parent=5 // pred_check_branch
        %133 = sbr.rel (%p131) target = $region24
      $region23: #{tpu_custom_call.1} parent=5 // pred_region
        // Predicated region
        $region25: #{tpu_custom_call.1} parent=23 // pred_check
          %p134 = pneg %p35
        $region26: #{tpu_custom_call.1} parent=23 // pred_check_branch
          %136 = sbr.rel (%p134) target = $region28
        $region27: #{tpu_custom_call.1} parent=23 // pred_region
          %s137 = sand.u32 %s25, 1
          %s138 = scalar_lea.sflag [#allocation3], %s137
          %s139 = sand.u32 %s25, 1
          %s140 = smul.addr %s139, 16
          %s141 = scalar_lea.vmem [#allocation2], %s140
          %s142 = smul.u32 2, %s15
          %s144 = ssub.s32 256, 256
          %145 = vsyncadd %s138, %s144
          %s146 = smul.addr %s142, 128
          %s147 = scalar_lea.hbm %s0, %s146
          %s148 = sshll.u32 %s141, 4
          %s149 = int_to_ptr.vmem [resolvable:$true] %s148
          %154 = dma.hbm_to_vmem [thread:$0]  %s147, 256, %s149, %s138, 128, 128, 8
        $region28: #{tpu_custom_call.1} parent=23 // pred_fallthru
          _
      $region24: #{tpu_custom_call.1} parent=5 // pred_fallthru
        _
      %p155 = scmp.le.s32.totalorder 1, %s15
      %p156 = scmp.lt.s32.totalorder %s15, 3
      %p157 = pnand %p155, %p156
      %p158 = pneg %p157
      // Predicated region
      $region29: #{tpu_custom_call.1} parent=5 // pred_check
        _
      $region30: #{tpu_custom_call.1} parent=5 // pred_check_branch
        %160 = sbr.rel (%p157) target = $region32
      $region31: #{tpu_custom_call.1} parent=5 // pred_region
        %s161 = ssub.s32 %s15, 1
        %s162 = sand.u32 %s28, 1
        %s163 = scalar_lea.sflag [#allocation3], %s162
        %s164 = sand.u32 %s28, 1
        %s165 = smul.addr %s164, 16
        %s166 = scalar_lea.vmem [#allocation2], %s165
        // Predicated region
        $region33: #{tpu_custom_call.1} parent=31 // pred_check
          %p167 = pneg %p41
        $region34: #{tpu_custom_call.1} parent=31 // pred_check_branch
          %169 = sbr.rel (%p167) target = $region36
        $region35: #{tpu_custom_call.1} parent=31 // pred_region
          %170 = dma.done %s163, 256
        $region36: #{tpu_custom_call.1} parent=31 // pred_fallthru
          _
        %s171 = sand.u32 %s28, 1
        %s172 = scalar_lea.sflag [#allocation3], %s171
        %s173 = sand.u32 %s28, 1
        %s174 = smul.addr %s173, 16
        %s175 = scalar_lea.vmem [#allocation2], %s174
        %p176 = pneg %p41
        %p177 = pneg %p38
        %p178 = pneg %p62
        %p179 = pneg %p59
        %p180 = pneg %p83
        %p181 = pneg %p80
        %p182 = pneg %p109
        %p183 = pneg %p106
        %s184 = sand.u32 %s96, 1
        %s185 = scalar_lea.sflag [#allocation4], %s184
        %s186 = sand.u32 %s96, 1
        %s187 = smul.addr %s186, 16
        %s188 = scalar_lea.vmem [#allocation5], %s187
        %s189 = smul.u32 2, %s20
        %s190 = smul.u32 2, %s20
        %v191 = vld [vmem:[%s166] sm:$0xff]
        %v192 = vld [vmem:[%s166 + $0x8] sm:$0xff]
        %vm193 = vcmask 261120
        %v194 = vsel %vm193, %v191, 0.0
        %195 = vadd.xlane.f32.xlu0 %v194
        %v196 = vpop.xlane.xlu0 %195
        %v197 = vsel %vm193, %v192, 0.0
        %198 = vadd.xlane.f32.xlu0 %v197
        %v199 = vpop.xlane.xlu0 %198
        %v200 = vmul.f32 %v191, %v191
        %v201 = vmul.f32 %v192, %v192
        %v202 = vsel %vm193, %v200, 0.0
        %203 = vadd.xlane.f32.xlu0 %v202
        %v204 = vpop.xlane.xlu0 %203
        %v205 = vsel %vm193, %v201, 0.0
        %206 = vadd.xlane.f32.xlu0 %v205
        %v207 = vpop.xlane.xlu0 %206
        %v208 = vmul.f32 %v196, 0.03125
        %v209 = vmul.f32 %v199, 0.03125
        %v210 = vmul.f32 %v204, 0.03125
        %v211 = vmul.f32 %v207, 0.03125
        %v212 = vmul.f32 %v208, %v208
        %v213 = vmul.f32 %v209, %v209
        %v214 = vsub.f32 %v210, %v212
        %v215 = vsub.f32 %v211, %v213
        %v216 = vmax.f32 %v214, 0.0
        %v217 = vmax.f32 %v215, 0.0
        %v218 = vadd.f32 %v216, 1e-05
        %v219 = vadd.f32 %v217, 1e-05
        %v220 = vrsqrt.pop %v218
        %v221 = vrsqrt.pop %v219
        %v222 = vld [vmem:[%s1] sm:$0x1]
        %v223 = vld [vmem:[%s2] sm:$0x1]
        %v224 = vsub.f32 %v191, %v208
        %v225 = vsub.f32 %v192, %v209
        %v226 = vmul.f32 %v224, %v220
        %v227 = vmul.f32 %v225, %v221
        %v229 = vlaneseq
        %v230 = vshrl.u32 %v229, 7
        %v231 = vsub.s32 0, %v230
        %v232 = vrot.slane %v222, %v231
        %v234 = vmul.f32 %v226, %v232
        %v235 = vmul.f32 %v227, %v232
        %v237 = vlaneseq
        %v238 = vshrl.u32 %v237, 7
        %v239 = vsub.s32 0, %v238
        %v240 = vrot.slane %v223, %v239
        %v242 = vadd.f32 %v234, %v240
        %v243 = vadd.f32 %v235, %v240
        %244 = vst.msk [vmem:[%s188] sm:$0xff] %vm193, %v242
        %245 = vst.msk [vmem:[%s188 + $0x8] sm:$0xff] %vm193, %v243
        %s246 = sand.u32 %s96, 1
        %s247 = scalar_lea.sflag [#allocation4], %s246
        %s248 = sand.u32 %s96, 1
        %s249 = smul.addr %s248, 16
        %s250 = scalar_lea.vmem [#allocation5], %s249
        // Predicated region
        $region37: #{tpu_custom_call.1} parent=31 // pred_check
          %p251 = pneg %p106
        $region38: #{tpu_custom_call.1} parent=31 // pred_check_branch
          %253 = sbr.rel (%p251) target = $region40
        $region39: #{tpu_custom_call.1} parent=31 // pred_region
          %s254 = smul.u32 2, %s20
          %s256 = ssub.s32 256, 256
          %257 = vsyncadd %s247, %s256
          %s258 = smul.addr %s254, 128
          %s259 = scalar_lea.hbm %s3, %s258
          %s260 = sshll.u32 %s250, 4
          %s261 = int_to_ptr.vmem [resolvable:$true] %s260
          %266 = dma.vmem_to_hbm [thread:$0]  %s261, 256, %s259, %s247, 128, 128, 8
        $region40: #{tpu_custom_call.1} parent=31 // pred_fallthru
          _
      $region32: #{tpu_custom_call.1} parent=5 // pred_fallthru
        _
      %p267 = scmp.le.s32.totalorder 2, %s15
      // Predicated region
      $region41: #{tpu_custom_call.1} parent=5 // pred_check
        %p268 = pneg %p267
      $region42: #{tpu_custom_call.1} parent=5 // pred_check_branch
        %270 = sbr.rel (%p268) target = $region44
      $region43: #{tpu_custom_call.1} parent=5 // pred_region
        %s271 = ssub.s32 %s15, 2
        // Predicated region
        $region45: #{tpu_custom_call.1} parent=43 // pred_check
          %p272 = pneg %p112
        $region46: #{tpu_custom_call.1} parent=43 // pred_check_branch
          %274 = sbr.rel (%p272) target = $region48
        $region47: #{tpu_custom_call.1} parent=43 // pred_region
          %s275 = sand.u32 %s97, 1
          %s276 = scalar_lea.sflag [#allocation4], %s275
          %s277 = sand.u32 %s97, 1
          %s278 = smul.addr %s277, 16
          %s279 = scalar_lea.vmem [#allocation5], %s278
          %280 = dma.done %s276, 256
        $region48: #{tpu_custom_call.1} parent=43 // pred_fallthru
          _
      $region44: #{tpu_custom_call.1} parent=5 // pred_fallthru
        _
    $region6: #{tpu_custom_call.1} parent=1 // loop_footer
      %s19 = sadd.s32 1, %s15
    $region7: #{tpu_custom_call.1} parent=1 // loop_footer_branch
      %14 = sbr.rel target = $region3
    $region8: #{tpu_custom_call.1} parent=1 // loop_exit
      _
    %281 = vsyncpa [#allocation3], 1
    %s282 = scalar_lea.sflag [#allocation3], 1
    %283 = vsyncpa %s282, 1
    %284 = vsyncpa [#allocation4], 1
    %s285 = scalar_lea.sflag [#allocation4], 1
    %286 = vsyncpa %s285, 1

</llo_original>
